<compile_context>
chip_gen: v5e
topology: v5e:2x2
jax: 0.10.0
libtpu: 0.0.40
codegen_flags: <defaults>
</compile_context>

<pallas_src>
import numpy as np
import jax
import jax.numpy as jnp
from jax.experimental import pallas as pl
from jax.experimental.pallas import tpu as pltpu


def _basic_block_kernel(xpad_ref, w1_ref, b1_ref, w2_ref, b2_ref,
                        out_ref, mid_ref):
    """One batch element per grid step.

    xpad_ref : (H+2, W*C)    f32   vertically zero-padded input rows
    w1_ref   : (3, W*C, W*C) bf16  conv1 block-banded weights (BN1 folded)
    b1_ref   : (1, W*C)      f32   folded BN1 bias, tiled over w
    w2_ref   : (3, W*C, W*C) bf16  conv2 block-banded weights (BN2 folded)
    b2_ref   : (1, W*C)      f32   folded BN2 bias, tiled over w
    out_ref  : (H, W*C)      f32   block output
    mid_ref  : (H+2, W*C)    f32   VMEM scratch: padded conv1 activation
    """
    Hp, WC = xpad_ref.shape
    H = Hp - 2

    def conv_rows(load_slab, w_ref):
        # 3x3 conv == sum over the 3 vertical taps of a row-shifted slab
        # times a block-banded (horizontal taps folded in) weight matrix.
        acc = jnp.dot(load_slab(0), w_ref[0],
                      preferred_element_type=jnp.float32)
        for kh in (1, 2):
            acc = acc + jnp.dot(load_slab(kh), w_ref[kh],
                                preferred_element_type=jnp.float32)
        return acc

    # ---- conv1 + BN1 + ReLU ----------------------------------------------
    act1 = conv_rows(lambda kh: xpad_ref[kh:kh + H, :].astype(jnp.bfloat16),
                     w1_ref)
    act1 = jnp.maximum(act1 + b1_ref[...], 0.0)

    # Padded conv1 activation: only the 2 border rows need re-zeroing each
    # step (megacore-safe); the interior is fully overwritten every step and
    # horizontal padding is folded into the banded weights.
    mid_ref[0:1, :] = jnp.zeros((1, WC), mid_ref.dtype)
    mid_ref[Hp - 1:Hp, :] = jnp.zeros((1, WC), mid_ref.dtype)
    mid_ref[1:H + 1, :] = act1

    # ---- conv2 + BN2 + residual + ReLU -------------------------------------
    act2 = conv_rows(lambda kh: mid_ref[kh:kh + H, :].astype(jnp.bfloat16),
                     w2_ref)
    act2 = act2 + b2_ref[...] + xpad_ref[1:H + 1, :]     # residual (f32 exact)
    out_ref[...] = jnp.maximum(act2, 0.0).astype(out_ref.dtype)


def _fold_bn(w_hwio, gamma, beta, mean, var, eps=1e-5):
    """Fold inference-mode BatchNorm into conv weights + bias."""
    scale = gamma / jnp.sqrt(var + eps)               # (C,)
    w_folded = w_hwio * scale[None, None, None, :]    # (3,3,Cin,Cout)
    bias = beta - mean * scale                        # (C,)
    return w_folded, bias


def _band_weights(w_hwio, W):
    """(3,3,Cin,Cout) HWIO conv weights -> (3, W*Cin, W*Cout) block-banded
    matrices, one per vertical tap kh.  Horizontal zero-padding of the conv
    is folded into the band structure (out-of-range horizontal taps = 0)."""
    Cin, Cout = w_hwio.shape[2], w_hwio.shape[3]
    P = np.zeros((3, W, W), np.float32)               # P[kw, w_in, w_out]
    for kw in range(3):
        for wo in range(W):
            wi = wo + kw - 1
            if 0 <= wi < W:
                P[kw, wi, wo] = 1.0
    band = jnp.einsum("xiw,hxcd->hicwd", P, w_hwio)   # (3, W, Cin, W, Cout)
    return band.reshape(3, W * Cin, W * Cout)


def basic_block_forward(x_nchw, params, eps=1e-5):
    """Wrapper: NCHW in / NCHW out, matching the PyTorch module."""
    w1f, b1 = _fold_bn(params["w1"], params["g1"], params["b1"],
                       params["m1"], params["v1"], eps)
    w2f, b2 = _fold_bn(params["w2"], params["g2"], params["b2"],
                       params["m2"], params["v2"], eps)
    C = w1f.shape[-1]
    B, _, H, W = x_nchw.shape
    WC = W * C
    Hp = H + 2

    # bf16 operands for the MXU; accumulation stays f32 inside the kernel.
    w1m = _band_weights(w1f, W).astype(jnp.bfloat16)        # (3, WC, WC)
    w2m = _band_weights(w2f, W).astype(jnp.bfloat16)        # (3, WC, WC)
    b1t = jnp.tile(b1, W).reshape(1, WC).astype(jnp.float32)
    b2t = jnp.tile(b2, W).reshape(1, WC).astype(jnp.float32)

    # (B,C,H,W) -> (B,H,W*C) rows, then vertical zero-pad only.
    x_rows = jnp.transpose(x_nchw, (0, 2, 3, 1)).astype(jnp.float32)
    x_rows = x_rows.reshape(B, H, WC)
    xpad = jnp.pad(x_rows, ((0, 0), (1, 1), (0, 0)))        # (B, Hp, WC)

    out = pl.pallas_call(
        _basic_block_kernel,
        out_shape=jax.ShapeDtypeStruct((B, H, WC), jnp.float32),
        grid_spec=pltpu.PrefetchScalarGridSpec(
            num_scalar_prefetch=0,
            grid=(B,),
            in_specs=[
                pl.BlockSpec((pl.Squeezed(), Hp, WC), lambda b: (b, 0, 0)),
                pl.BlockSpec((3, WC, WC), lambda b: (0, 0, 0)),
                pl.BlockSpec((1, WC), lambda b: (0, 0)),
                pl.BlockSpec((3, WC, WC), lambda b: (0, 0, 0)),
                pl.BlockSpec((1, WC), lambda b: (0, 0)),
            ],
            out_specs=pl.BlockSpec((pl.Squeezed(), H, WC),
                                   lambda b: (b, 0, 0)),
            scratch_shapes=[
                pltpu.VMEM((Hp, WC), jnp.float32),   # padded conv1 activation
            ],
        ),
        compiler_params=pltpu.CompilerParams(
            dimension_semantics=("parallel",)),
    )(xpad, w1m, b1t, w2m, b2t)

    return jnp.transpose(out.reshape(B, H, W, C), (0, 3, 1, 2))


def _reference(x_nchw, p, eps=1e-5):
    """Pure-JAX f32 reference of the same forward pass (for verification)."""
    def conv(x, w):
        return jax.lax.conv_general_dilated(
            x, w, window_strides=(1, 1), padding="SAME",
            dimension_numbers=("NHWC", "HWIO", "NHWC"))

    def bn(x, g, b, m, v):
        return g * (x - m) / jnp.sqrt(v + eps) + b

    x = jnp.transpose(x_nchw, (0, 2, 3, 1))
    out = conv(x, p["w1"])
    out = bn(out, p["g1"], p["b1"], p["m1"], p["v1"])
    out = jax.nn.relu(out)
    out = conv(out, p["w2"])
    out = bn(out, p["g2"], p["b2"], p["m2"], p["v2"])
    out = jax.nn.relu(out + x)
    return jnp.transpose(out, (0, 3, 1, 2))


if __name__ == "__main__":
    B, C, H, W = 2, 4, 16, 16          # inplanes == planes == 4, stride=1
    key = jax.random.PRNGKey(0)
    ks = jax.random.split(key, 11)

    x = jax.random.normal(ks[0], (B, C, H, W), dtype=jnp.float32)

    params = {
        # conv weights in HWIO (kh, kw, cin, cout)
        "w1": jax.random.normal(ks[1], (3, 3, C, C), jnp.float32) * 0.1,
        "w2": jax.random.normal(ks[2], (3, 3, C, C), jnp.float32) * 0.1,
        # BatchNorm parameters / running stats (inference semantics)
        "g1": 1.0 + 0.1 * jax.random.normal(ks[3], (C,), jnp.float32),
        "b1": 0.1 * jax.random.normal(ks[4], (C,), jnp.float32),
        "m1": 0.1 * jax.random.normal(ks[5], (C,), jnp.float32),
        "v1": jnp.abs(jax.random.normal(ks[6], (C,), jnp.float32)) + 0.5,
        "g2": 1.0 + 0.1 * jax.random.normal(ks[7], (C,), jnp.float32),
        "b2": 0.1 * jax.random.normal(ks[8], (C,), jnp.float32),
        "m2": 0.1 * jax.random.normal(ks[9], (C,), jnp.float32),
        "v2": jnp.abs(jax.random.normal(ks[10], (C,), jnp.float32)) + 0.5,
    }

    out = basic_block_forward(x, params)
    out = jax.block_until_ready(out)

    ref = jax.block_until_ready(_reference(x, params))
    # bf16 matmul operands (f32 accumulation / residual) -> loosened tolerance.
    if not np.allclose(np.asarray(out), np.asarray(ref), atol=3e-2, rtol=3e-2):
        raise AssertionError("Pallas BasicBlock output mismatch vs JAX reference")

    print("KERNEL_OK")
</pallas_src>

<mosaic_0001>
module attributes {stable_mosaic.version = 11 : i64} {
  func.func @_basic_block_kernel(%arg0: i32, %arg1: memref<1x18x64xf32, #tpu.memory_space<vmem>>, %arg2: memref<3x64x64xbf16, #tpu.memory_space<vmem>>, %arg3: memref<1x64xf32, #tpu.memory_space<vmem>>, %arg4: memref<3x64x64xbf16, #tpu.memory_space<vmem>>, %arg5: memref<1x64xf32, #tpu.memory_space<vmem>>, %arg6: memref<1x16x64xf32, #tpu.memory_space<vmem>>, %arg7: memref<18x64xf32, #tpu.memory_space<vmem>>) attributes {dimension_semantics = [#tpu.dimension_semantics<parallel>], iteration_bounds = array<i64: 2>, scalar_prefetch = 0 : i64, scratch_operands = 1 : i64, tpu.core_type = #tpu.core_type<tc>, window_params = [{transform_indices = @transform_0, window_bounds = array<i64: 1, 18, 64>}, {pipeline_mode = #tpu.pipeline_mode<synchronous>, transform_indices = @transform_1, window_bounds = array<i64: 3, 64, 64>}, {pipeline_mode = #tpu.pipeline_mode<synchronous>, transform_indices = @transform_2, window_bounds = array<i64: 1, 64>}, {pipeline_mode = #tpu.pipeline_mode<synchronous>, transform_indices = @transform_3, window_bounds = array<i64: 3, 64, 64>}, {pipeline_mode = #tpu.pipeline_mode<synchronous>, transform_indices = @transform_4, window_bounds = array<i64: 1, 64>}, {transform_indices = @transform_5, window_bounds = array<i64: 1, 16, 64>}]} {
    %c0 = arith.constant 0 : index
    %c0_0 = arith.constant 0 : index
    %c0_1 = arith.constant 0 : index
    %0 = vector.load %arg1[%c0, %c0_0, %c0_1] : memref<1x18x64xf32, #tpu.memory_space<vmem>>, vector<1x16x64xf32>
    %1 = vector.shape_cast %0 : vector<1x16x64xf32> to vector<16x64xf32>
    %2 = arith.truncf %1 : vector<16x64xf32> to vector<16x64xbf16>
    %c0_2 = arith.constant 0 : index
    %c0_3 = arith.constant 0 : index
    %c0_4 = arith.constant 0 : index
    %3 = vector.load %arg2[%c0_2, %c0_3, %c0_4] : memref<3x64x64xbf16, #tpu.memory_space<vmem>>, vector<1x64x64xbf16>
    %4 = vector.shape_cast %3 : vector<1x64x64xbf16> to vector<64x64xbf16>
    %cst = arith.constant dense<0.000000e+00> : vector<16x64xf32>
    %5 = tpu.matmul %2, %4, %cst {dimension_numbers = #tpu.dot_dimension_numbers<[1], [0], [0], [1], [0, 0, 1, 1], [], []>} : vector<16x64xbf16>, vector<64x64xbf16>, vector<16x64xf32> -> vector<16x64xf32>
    %c0_5 = arith.constant 0 : index
    %c1 = arith.constant 1 : index
    %c0_6 = arith.constant 0 : index
    %6 = vector.load %arg1[%c0_5, %c1, %c0_6] : memref<1x18x64xf32, #tpu.memory_space<vmem>>, vector<1x16x64xf32>
    %7 = vector.shape_cast %6 : vector<1x16x64xf32> to vector<16x64xf32>
    %8 = arith.truncf %7 : vector<16x64xf32> to vector<16x64xbf16>
    %c1_7 = arith.constant 1 : index
    %c0_8 = arith.constant 0 : index
    %c0_9 = arith.constant 0 : index
    %9 = vector.load %arg2[%c1_7, %c0_8, %c0_9] : memref<3x64x64xbf16, #tpu.memory_space<vmem>>, vector<1x64x64xbf16>
    %10 = vector.shape_cast %9 : vector<1x64x64xbf16> to vector<64x64xbf16>
    %cst_10 = arith.constant dense<0.000000e+00> : vector<16x64xf32>
    %11 = tpu.matmul %8, %10, %cst_10 {dimension_numbers = #tpu.dot_dimension_numbers<[1], [0], [0], [1], [0, 0, 1, 1], [], []>} : vector<16x64xbf16>, vector<64x64xbf16>, vector<16x64xf32> -> vector<16x64xf32>
    %12 = arith.addf %5, %11 : vector<16x64xf32>
    %c0_11 = arith.constant 0 : index
    %c2 = arith.constant 2 : index
    %c0_12 = arith.constant 0 : index
    %13 = vector.load %arg1[%c0_11, %c2, %c0_12] : memref<1x18x64xf32, #tpu.memory_space<vmem>>, vector<1x16x64xf32>
    %14 = vector.shape_cast %13 : vector<1x16x64xf32> to vector<16x64xf32>
    %15 = arith.truncf %14 : vector<16x64xf32> to vector<16x64xbf16>
    %c2_13 = arith.constant 2 : index
    %c0_14 = arith.constant 0 : index
    %c0_15 = arith.constant 0 : index
    %16 = vector.load %arg2[%c2_13, %c0_14, %c0_15] : memref<3x64x64xbf16, #tpu.memory_space<vmem>>, vector<1x64x64xbf16>
    %17 = vector.shape_cast %16 : vector<1x64x64xbf16> to vector<64x64xbf16>
    %cst_16 = arith.constant dense<0.000000e+00> : vector<16x64xf32>
    %18 = tpu.matmul %15, %17, %cst_16 {dimension_numbers = #tpu.dot_dimension_numbers<[1], [0], [0], [1], [0, 0, 1, 1], [], []>} : vector<16x64xbf16>, vector<64x64xbf16>, vector<16x64xf32> -> vector<16x64xf32>
    %19 = arith.addf %12, %18 : vector<16x64xf32>
    %c0_17 = arith.constant 0 : index
    %c0_18 = arith.constant 0 : index
    %20 = vector.load %arg3[%c0_17, %c0_18] : memref<1x64xf32, #tpu.memory_space<vmem>>, vector<1x64xf32>
    %21 = vector.broadcast %20 : vector<1x64xf32> to vector<16x64xf32>
    %22 = arith.addf %19, %21 : vector<16x64xf32>
    %cst_19 = arith.constant 0.000000e+00 : f32
    %23 = vector.broadcast %cst_19 : f32 to vector<16x64xf32>
    %24 = arith.maximumf %22, %23 : vector<16x64xf32>
    %cst_20 = arith.constant 0.000000e+00 : f32
    %25 = vector.broadcast %cst_20 : f32 to vector<1x64xf32>
    %c0_21 = arith.constant 0 : index
    %c0_22 = arith.constant 0 : index
    %26 = vector.load %arg7[%c0_21, %c0_22] : memref<18x64xf32, #tpu.memory_space<vmem>>, vector<1x64xf32>
    tpu.vector_store %arg7[%c0_21, %c0_22], %25 {strides = array<i32>} : memref<18x64xf32, #tpu.memory_space<vmem>>, vector<1x64xf32>,
    %cst_23 = arith.constant 0.000000e+00 : f32
    %27 = vector.broadcast %cst_23 : f32 to vector<1x64xf32>
    %c17 = arith.constant 17 : index
    %c0_24 = arith.constant 0 : index
    %28 = vector.load %arg7[%c17, %c0_24] : memref<18x64xf32, #tpu.memory_space<vmem>>, vector<1x64xf32>
    tpu.vector_store %arg7[%c17, %c0_24], %27 {strides = array<i32>} : memref<18x64xf32, #tpu.memory_space<vmem>>, vector<1x64xf32>,
    %c1_25 = arith.constant 1 : index
    %c0_26 = arith.constant 0 : index
    %29 = vector.load %arg7[%c1_25, %c0_26] : memref<18x64xf32, #tpu.memory_space<vmem>>, vector<16x64xf32>
    tpu.vector_store %arg7[%c1_25, %c0_26], %24 {strides = array<i32>} : memref<18x64xf32, #tpu.memory_space<vmem>>, vector<16x64xf32>,
    %c0_27 = arith.constant 0 : index
    %c0_28 = arith.constant 0 : index
    %30 = vector.load %arg7[%c0_27, %c0_28] : memref<18x64xf32, #tpu.memory_space<vmem>>, vector<16x64xf32>
    %31 = arith.truncf %30 : vector<16x64xf32> to vector<16x64xbf16>
    %c0_29 = arith.constant 0 : index
    %c0_30 = arith.constant 0 : index
    %c0_31 = arith.constant 0 : index
    %32 = vector.load %arg4[%c0_29, %c0_30, %c0_31] : memref<3x64x64xbf16, #tpu.memory_space<vmem>>, vector<1x64x64xbf16>
    %33 = vector.shape_cast %32 : vector<1x64x64xbf16> to vector<64x64xbf16>
    %cst_32 = arith.constant dense<0.000000e+00> : vector<16x64xf32>
    %34 = tpu.matmul %31, %33, %cst_32 {dimension_numbers = #tpu.dot_dimension_numbers<[1], [0], [0], [1], [0, 0, 1, 1], [], []>} : vector<16x64xbf16>, vector<64x64xbf16>, vector<16x64xf32> -> vector<16x64xf32>
    %c1_33 = arith.constant 1 : index
    %c0_34 = arith.constant 0 : index
    %35 = vector.load %arg7[%c1_33, %c0_34] : memref<18x64xf32, #tpu.memory_space<vmem>>, vector<16x64xf32>
    %36 = arith.truncf %35 : vector<16x64xf32> to vector<16x64xbf16>
    %c1_35 = arith.constant 1 : index
    %c0_36 = arith.constant 0 : index
    %c0_37 = arith.constant 0 : index
    %37 = vector.load %arg4[%c1_35, %c0_36, %c0_37] : memref<3x64x64xbf16, #tpu.memory_space<vmem>>, vector<1x64x64xbf16>
    %38 = vector.shape_cast %37 : vector<1x64x64xbf16> to vector<64x64xbf16>
    %cst_38 = arith.constant dense<0.000000e+00> : vector<16x64xf32>
    %39 = tpu.matmul %36, %38, %cst_38 {dimension_numbers = #tpu.dot_dimension_numbers<[1], [0], [0], [1], [0, 0, 1, 1], [], []>} : vector<16x64xbf16>, vector<64x64xbf16>, vector<16x64xf32> -> vector<16x64xf32>
    %40 = arith.addf %34, %39 : vector<16x64xf32>
    %c2_39 = arith.constant 2 : index
    %c0_40 = arith.constant 0 : index
    %41 = vector.load %arg7[%c2_39, %c0_40] : memref<18x64xf32, #tpu.memory_space<vmem>>, vector<16x64xf32>
    %42 = arith.truncf %41 : vector<16x64xf32> to vector<16x64xbf16>
    %c2_41 = arith.constant 2 : index
    %c0_42 = arith.constant 0 : index
    %c0_43 = arith.constant 0 : index
    %43 = vector.load %arg4[%c2_41, %c0_42, %c0_43] : memref<3x64x64xbf16, #tpu.memory_space<vmem>>, vector<1x64x64xbf16>
    %44 = vector.shape_cast %43 : vector<1x64x64xbf16> to vector<64x64xbf16>
    %cst_44 = arith.constant dense<0.000000e+00> : vector<16x64xf32>
    %45 = tpu.matmul %42, %44, %cst_44 {dimension_numbers = #tpu.dot_dimension_numbers<[1], [0], [0], [1], [0, 0, 1, 1], [], []>} : vector<16x64xbf16>, vector<64x64xbf16>, vector<16x64xf32> -> vector<16x64xf32>
    %46 = arith.addf %40, %45 : vector<16x64xf32>
    %c0_45 = arith.constant 0 : index
    %c0_46 = arith.constant 0 : index
    %47 = vector.load %arg5[%c0_45, %c0_46] : memref<1x64xf32, #tpu.memory_space<vmem>>, vector<1x64xf32>
    %48 = vector.broadcast %47 : vector<1x64xf32> to vector<16x64xf32>
    %49 = arith.addf %46, %48 : vector<16x64xf32>
    %c0_47 = arith.constant 0 : index
    %c1_48 = arith.constant 1 : index
    %c0_49 = arith.constant 0 : index
    %50 = vector.load %arg1[%c0_47, %c1_48, %c0_49] : memref<1x18x64xf32, #tpu.memory_space<vmem>>, vector<1x16x64xf32>
    %51 = vector.shape_cast %50 : vector<1x16x64xf32> to vector<16x64xf32>
    %52 = arith.addf %49, %51 : vector<16x64xf32>
    %cst_50 = arith.constant 0.000000e+00 : f32
    %53 = vector.broadcast %cst_50 : f32 to vector<16x64xf32>
    %54 = arith.maximumf %52, %53 : vector<16x64xf32>
    %c0_51 = arith.constant 0 : index
    %c0_52 = arith.constant 0 : index
    %c0_53 = arith.constant 0 : index
    %55 = vector.load %arg6[%c0_51, %c0_52, %c0_53] : memref<1x16x64xf32, #tpu.memory_space<vmem>>, vector<1x16x64xf32>
    %56 = vector.shape_cast %55 : vector<1x16x64xf32> to vector<16x64xf32>
    %57 = vector.shape_cast %54 : vector<16x64xf32> to vector<1x16x64xf32>
    tpu.vector_store %arg6[%c0_51, %c0_52, %c0_53], %57 {strides = array<i32>} : memref<1x16x64xf32, #tpu.memory_space<vmem>>, vector<1x16x64xf32>,
    return
  }
  func.func @transform_0(%arg0: i32) -> (i32, i32, i32) {
    %c0_i32 = arith.constant 0 : i32
    %c0_i32_0 = arith.constant 0 : i32
    %c0_i32_1 = arith.constant 0 : i32
    return %arg0, %c0_i32, %c0_i32_0 : i32, i32, i32
  }
  func.func @transform_1(%arg0: i32) -> (i32, i32, i32) {
    %c0_i32 = arith.constant 0 : i32
    %c0_i32_0 = arith.constant 0 : i32
    %c0_i32_1 = arith.constant 0 : i32
    %c0_i32_2 = arith.constant 0 : i32
    return %c0_i32, %c0_i32_0, %c0_i32_1 : i32, i32, i32
  }
  func.func @transform_2(%arg0: i32) -> (i32, i32) {
    %c0_i32 = arith.constant 0 : i32
    %c0_i32_0 = arith.constant 0 : i32
    %c0_i32_1 = arith.constant 0 : i32
    return %c0_i32, %c0_i32_0 : i32, i32
  }
  func.func @transform_3(%arg0: i32) -> (i32, i32, i32) {
    %c0_i32 = arith.constant 0 : i32
    %c0_i32_0 = arith.constant 0 : i32
    %c0_i32_1 = arith.constant 0 : i32
    %c0_i32_2 = arith.constant 0 : i32
    return %c0_i32, %c0_i32_0, %c0_i32_1 : i32, i32, i32
  }
  func.func @transform_4(%arg0: i32) -> (i32, i32) {
    %c0_i32 = arith.constant 0 : i32
    %c0_i32_0 = arith.constant 0 : i32
    %c0_i32_1 = arith.constant 0 : i32
    return %c0_i32, %c0_i32_0 : i32, i32
  }
  func.func @transform_5(%arg0: i32) -> (i32, i32, i32) {
    %c0_i32 = arith.constant 0 : i32
    %c0_i32_0 = arith.constant 0 : i32
    %c0_i32_1 = arith.constant 0 : i32
    return %arg0, %c0_i32, %c0_i32_0 : i32, i32, i32
  }
}

</mosaic_0001>

<llo_original>
// kernel: tpu_custom_call.1
$region0: #{tpu_custom_call.1}
  #allocation0 [shape = 'u32[]', space=smem, size = 0x4, offset = 0x4, fixed_abs, tag = 'smem constant byte address 0x4 - core index']
  #allocation1 [shape = 'u32[72,128]{1,0:T(1,128)}', space=vmem, size = 0x9000, scoped, tag = 'internal scratch']
  #allocation2 [shape = 'f32[18,64]{1,0:T(8,128)}', space=vmem, size = 0x3000, scoped, tag = 'scratch operand']
  %s0 = inlined_call_operand.vmem [shape: f32[2,18,64], index: 0, kind: input, shape index: {}]
  %s1 = inlined_call_operand.hbm [shape: bf16[3,64,64], index: 1, kind: input, shape index: {}]
  %s2 = inlined_call_operand.vmem [shape: f32[1,64], index: 2, kind: input, shape index: {}]
  %s3 = inlined_call_operand.hbm [shape: bf16[3,64,64], index: 3, kind: input, shape index: {}]
  %s4 = inlined_call_operand.vmem [shape: f32[1,64], index: 4, kind: input, shape index: {}]
  %s5 = inlined_call_operand.hbm [shape: f32[2,16,64], index: 5, kind: output, shape index: {}]
  %s6 = sld [smem:[#allocation0]]
  $region61: #{tpu_custom_call.1} parent=0
    _
  %s8 = ssub.s32 1, %s6
  %s9 = scalar_select 0, %s8, %s6
  $region1: #{tpu_custom_call.1} parent=0
    #allocation3 [shape = 'u8[49152]{0}', space=vmem, size = 0xc000, scoped, tag = 'input window, operand 1, single buffered']
    #allocation4 [shape = 's32[2]{0}', space=sflag, size = 0x8, scoped, tag = 'scoped memory for tpu_custom_call.1']
    #allocation5 [shape = 's32[2]{0}', space=sflag, size = 0x8, scoped, tag = 'scoped memory for tpu_custom_call.1']
    #allocation6 [shape = 'u8[49152]{0}', space=vmem, size = 0xc000, scoped, tag = 'input window, operand 3, single buffered']
    #allocation7 [shape = 's32[1]{0}', space=sflag, size = 0x4, scoped, tag = 'scoped memory for tpu_custom_call.1']
    #allocation8 [shape = 'u8[16384]{0}', space=vmem, size = 0x4000, scoped, tag = 'output window, operand 0']
    %10 = vsyncpa [#allocation4], 0
    %11 = vsyncpa [#allocation7], 0
    %12 = vsyncpa [#allocation5], 0
    %s13 = scalar_lea.sflag [#allocation5], 1
    %14 = vsyncpa %s13, 0
    loop: start=0, step=1, limit=4
    $region2: #{tpu_custom_call.1} parent=1 // loop_pre_header
      _
    $region3: #{tpu_custom_call.1} parent=1 // loop_header
      %s16 = sphi 0, %s20
      %p17 = scmp.ge.s32.totalorder %s16, 4
      %s26 = sphi 0, %s28
      %s29 = sphi 0, %s26
      %s30 = sphi 0, %s29
      %s46 = sphi 0, %s30
      %s50 = sphi 0, %s50
      %s52 = sphi 0, %s50
      %s53 = sphi 0, %s52
      %s67 = sphi 0, %s53
      %s71 = sphi 0, %s71
      %s73 = sphi 0, %s71
      %s74 = sphi 0, %s73
      %s88 = sphi 0, %s74
      %s92 = sphi 0, %s92
      %s94 = sphi 0, %s92
      %s95 = sphi 0, %s94
      %s109 = sphi 0, %s95
      %s113 = sphi 0, %s113
      %s115 = sphi 0, %s113
      %s116 = sphi 0, %s115
      %s130 = sphi 0, %s116
      %s136 = sphi 0, %s138
      %s139 = sphi 0, %s136
      %s140 = sphi 0, %s139
      %s156 = sphi 0, %s140
    $region4: #{tpu_custom_call.1} parent=1 // loop_header_branch
      %19 = sbr.rel (%p17) target = $region8
    $region5: #{tpu_custom_call.1} parent=1 // loop_body
      %s21 = ssub.s32 %s16, 1
      %s22 = ssub.s32 %s16, 2
      %s23 = sadd.s32 %s16, 1
      %s24 = ssub.s32 %s16, %s23
      %p25 = scmp.eq.s32.totalorder %s24, 0
      %s27 = sadd.s32 %s26, 1
      %s28 = scalar_select %p25, %s26, %s27
      %p31 = pneg %p25
      %p32 = scmp.eq.s32.totalorder %s16, 1
      %p33 = por %p31, %p32
      %p34 = scmp.ne.s32.totalorder %s26, %s29
      %p35 = scmp.eq.s32.totalorder %s16, 0
      %p36 = por %p34, %p35
      %p37 = scmp.ne.s32.totalorder %s26, %s29
      %p38 = scmp.eq.s32.totalorder %s21, 1
      %p39 = por %p37, %p38
      %p40 = scmp.ne.s32.totalorder %s29, %s30
      %p41 = scmp.eq.s32.totalorder %s21, 0
      %p42 = por %p40, %p41
      %p43 = scmp.ne.s32.totalorder %s29, %s30
      %p44 = scmp.eq.s32.totalorder %s22, 1
      %p45 = por %p43, %p44
      %p47 = scmp.ne.s32.totalorder %s30, %s46
      %p48 = scmp.eq.s32.totalorder %s22, 0
      %p49 = por %p47, %p48
      %s51 = sadd.s32 %s50, 1
      %p54 = scmp.eq.s32.totalorder %s16, 1
      %p55 = scmp.ne.s32.totalorder %s50, %s52
      %p56 = scmp.eq.s32.totalorder %s16, 0
      %p57 = por %p55, %p56
      %p58 = scmp.ne.s32.totalorder %s50, %s52
      %p59 = scmp.eq.s32.totalorder %s21, 1
      %p60 = por %p58, %p59
      %p61 = scmp.ne.s32.totalorder %s52, %s53
      %p62 = scmp.eq.s32.totalorder %s21, 0
      %p63 = por %p61, %p62
      %p64 = scmp.ne.s32.totalorder %s52, %s53
      %p65 = scmp.eq.s32.totalorder %s22, 1
      %p66 = por %p64, %p65
      %p68 = scmp.ne.s32.totalorder %s53, %s67
      %p69 = scmp.eq.s32.totalorder %s22, 0
      %p70 = por %p68, %p69
      %s72 = sadd.s32 %s71, 1
      %p75 = scmp.eq.s32.totalorder %s16, 1
      %p76 = scmp.ne.s32.totalorder %s71, %s73
      %p77 = scmp.eq.s32.totalorder %s16, 0
      %p78 = por %p76, %p77
      %p79 = scmp.ne.s32.totalorder %s71, %s73
      %p80 = scmp.eq.s32.totalorder %s21, 1
      %p81 = por %p79, %p80
      %p82 = scmp.ne.s32.totalorder %s73, %s74
      %p83 = scmp.eq.s32.totalorder %s21, 0
      %p84 = por %p82, %p83
      %p85 = scmp.ne.s32.totalorder %s73, %s74
      %p86 = scmp.eq.s32.totalorder %s22, 1
      %p87 = por %p85, %p86
      %p89 = scmp.ne.s32.totalorder %s74, %s88
      %p90 = scmp.eq.s32.totalorder %s22, 0
      %p91 = por %p89, %p90
      %s93 = sadd.s32 %s92, 1
      %p96 = scmp.eq.s32.totalorder %s16, 1
      %p97 = scmp.ne.s32.totalorder %s92, %s94
      %p98 = scmp.eq.s32.totalorder %s16, 0
      %p99 = por %p97, %p98
      %p100 = scmp.ne.s32.totalorder %s92, %s94
      %p101 = scmp.eq.s32.totalorder %s21, 1
      %p102 = por %p100, %p101
      %p103 = scmp.ne.s32.totalorder %s94, %s95
      %p104 = scmp.eq.s32.totalorder %s21, 0
      %p105 = por %p103, %p104
      %p106 = scmp.ne.s32.totalorder %s94, %s95
      %p107 = scmp.eq.s32.totalorder %s22, 1
      %p108 = por %p106, %p107
      %p110 = scmp.ne.s32.totalorder %s95, %s109
      %p111 = scmp.eq.s32.totalorder %s22, 0
      %p112 = por %p110, %p111
      %s114 = sadd.s32 %s113, 1
      %p117 = scmp.eq.s32.totalorder %s16, 1
      %p118 = scmp.ne.s32.totalorder %s113, %s115
      %p119 = scmp.eq.s32.totalorder %s16, 0
      %p120 = por %p118, %p119
      %p121 = scmp.ne.s32.totalorder %s113, %s115
      %p122 = scmp.eq.s32.totalorder %s21, 1
      %p123 = por %p121, %p122
      %p124 = scmp.ne.s32.totalorder %s115, %s116
      %p125 = scmp.eq.s32.totalorder %s21, 0
      %p126 = por %p124, %p125
      %p127 = scmp.ne.s32.totalorder %s115, %s116
      %p128 = scmp.eq.s32.totalorder %s22, 1
      %p129 = por %p127, %p128
      %p131 = scmp.ne.s32.totalorder %s116, %s130
      %p132 = scmp.eq.s32.totalorder %s22, 0
      %p133 = por %p131, %p132
      %s134 = ssub.s32 %s16, %s23
      %p135 = scmp.eq.s32.totalorder %s134, 0
      %s137 = sadd.s32 %s136, 1
      %s138 = scalar_select %p135, %s136, %s137
      %p141 = pneg %p135
      %p142 = scmp.eq.s32.totalorder %s16, 1
      %p143 = por %p141, %p142
      %p144 = scmp.ne.s32.totalorder %s136, %s139
      %p145 = scmp.eq.s32.totalorder %s16, 0
      %p146 = por %p144, %p145
      %p147 = scmp.ne.s32.totalorder %s136, %s139
      %p148 = scmp.eq.s32.totalorder %s21, 1
      %p149 = por %p147, %p148
      %p150 = scmp.ne.s32.totalorder %s139, %s140
      %p151 = scmp.eq.s32.totalorder %s21, 0
      %p152 = por %p150, %p151
      %p153 = scmp.ne.s32.totalorder %s139, %s140
      %p154 = scmp.eq.s32.totalorder %s22, 1
      %p155 = por %p153, %p154
      %p157 = scmp.ne.s32.totalorder %s140, %s156
      %p158 = scmp.eq.s32.totalorder %s22, 0
      %p159 = por %p157, %p158
      %p160 = scmp.le.s32.totalorder 1, %s16
      %p161 = scmp.lt.s32.totalorder %s16, 3
      %p162 = pnand %p160, %p161
      %p163 = pneg %p162
      // Predicated region
      $region9: #{tpu_custom_call.1} parent=5 // pred_check
        _
      $region10: #{tpu_custom_call.1} parent=5 // pred_check_branch
        %165 = sbr.rel (%p162) target = $region12
      $region11: #{tpu_custom_call.1} parent=5 // pred_region
        %s166 = ssub.s32 %s16, 1
        // Predicated region
        $region13: #{tpu_custom_call.1} parent=11 // pred_check
          %p167 = pneg %p63
        $region14: #{tpu_custom_call.1} parent=11 // pred_check_branch
          %169 = sbr.rel (%p167) target = $region16
        $region15: #{tpu_custom_call.1} parent=11 // pred_region
          %171 = vsyncadd [#allocation4], 0
          %s172 = sshll.u32 %s1, 4
          %s173 = int_to_ptr.hbm [resolvable:$true] %s172
          %s174 = sshll.u32 [#allocation3], 4
          %s175 = int_to_ptr.vmem [resolvable:$true] %s174
          %180 = dma.hbm_to_vmem [thread:$0]  %s173, 1536, %s175, [#allocation4], 64, 64, 4
        $region16: #{tpu_custom_call.1} parent=11 // pred_fallthru
          _
        // Predicated region
        $region17: #{tpu_custom_call.1} parent=11 // pred_check
          %p181 = pneg %p84
        $region18: #{tpu_custom_call.1} parent=11 // pred_check_branch
          %183 = sbr.rel (%p181) target = $region20
        $region19: #{tpu_custom_call.1} parent=11 // pred_region
          _
        $region20: #{tpu_custom_call.1} parent=11 // pred_fallthru
          _
        // Predicated region
        $region21: #{tpu_custom_call.1} parent=11 // pred_check
          %p184 = pneg %p105
        $region22: #{tpu_custom_call.1} parent=11 // pred_check_branch
          %186 = sbr.rel (%p184) target = $region24
        $region23: #{tpu_custom_call.1} parent=11 // pred_region
          %188 = vsyncadd [#allocation7], 0
          %s189 = sshll.u32 %s3, 4
          %s190 = int_to_ptr.hbm [resolvable:$true] %s189
          %s191 = sshll.u32 [#allocation6], 4
          %s192 = int_to_ptr.vmem [resolvable:$true] %s191
          %197 = dma.hbm_to_vmem [thread:$0]  %s190, 1536, %s192, [#allocation7], 64, 64, 4
        $region24: #{tpu_custom_call.1} parent=11 // pred_fallthru
          _
        // Predicated region
        $region25: #{tpu_custom_call.1} parent=11 // pred_check
          %p198 = pneg %p126
        $region26: #{tpu_custom_call.1} parent=11 // pred_check_branch
          %200 = sbr.rel (%p198) target = $region28
        $region27: #{tpu_custom_call.1} parent=11 // pred_region
          _
        $region28: #{tpu_custom_call.1} parent=11 // pred_fallthru
          _
      $region12: #{tpu_custom_call.1} parent=5 // pred_fallthru
        _
      %p201 = scmp.lt.s32.totalorder %s16, 2
      // Predicated region
      $region29: #{tpu_custom_call.1} parent=5 // pred_check
        %p202 = pneg %p201
      $region30: #{tpu_custom_call.1} parent=5 // pred_check_branch
        %204 = sbr.rel (%p202) target = $region32
      $region31: #{tpu_custom_call.1} parent=5 // pred_region
        // Predicated region
        $region33: #{tpu_custom_call.1} parent=31 // pred_check
          %p205 = pneg %p36
        $region34: #{tpu_custom_call.1} parent=31 // pred_check_branch
          %207 = sbr.rel (%p205) target = $region36
        $region35: #{tpu_custom_call.1} parent=31 // pred_region
          %p208 = scmp.lt.s32.totalorder %s16, 1
          %s209 = scalar_select %p208, %s16, 1
          %s210 = smul.addr %s209, 3
          %s211 = smul.addr %s210, 8
          %s212 = scalar_lea.vmem %s0, %s211
        $region36: #{tpu_custom_call.1} parent=31 // pred_fallthru
          _
      $region32: #{tpu_custom_call.1} parent=5 // pred_fallthru
        _
      %p213 = scmp.le.s32.totalorder 1, %s16
      %p214 = scmp.lt.s32.totalorder %s16, 3
      %p215 = pnand %p213, %p214
      %p216 = pneg %p215
      // Predicated region
      $region37: #{tpu_custom_call.1} parent=5 // pred_check
        _
      $region38: #{tpu_custom_call.1} parent=5 // pred_check_branch
        %218 = sbr.rel (%p215) target = $region40
      $region39: #{tpu_custom_call.1} parent=5 // pred_region
        %s219 = ssub.s32 %s16, 1
        // Predicated region
        $region41: #{tpu_custom_call.1} parent=39 // pred_check
          %p220 = pneg %p63
        $region42: #{tpu_custom_call.1} parent=39 // pred_check_branch
          %222 = sbr.rel (%p220) target = $region44
        $region43: #{tpu_custom_call.1} parent=39 // pred_region
          %224 = dma.done [#allocation4], 1536
        $region44: #{tpu_custom_call.1} parent=39 // pred_fallthru
          _
        // Predicated region
        $region45: #{tpu_custom_call.1} parent=39 // pred_check
          %p225 = pneg %p105
        $region46: #{tpu_custom_call.1} parent=39 // pred_check_branch
          %227 = sbr.rel (%p225) target = $region48
        $region47: #{tpu_custom_call.1} parent=39 // pred_region
          %229 = dma.done [#allocation7], 1536
        $region48: #{tpu_custom_call.1} parent=39 // pred_fallthru
          _
        %p230 = scmp.lt.s32.totalorder %s21, 1
        %s231 = scalar_select %p230, %s21, 1
        %s232 = smul.addr %s231, 3
        %s233 = smul.addr %s232, 8
        %s234 = scalar_lea.vmem %s0, %s233
        %p235 = pneg %p42
        %p236 = pneg %p39
        %p237 = pneg %p63
        %p238 = pneg %p60
        %p239 = pneg %p84
        %p240 = pneg %p81
        %p241 = pneg %p105
        %p242 = pneg %p102
        %p243 = pneg %p126
        %p244 = pneg %p123
        %p245 = pneg %p152
        %p246 = pneg %p149
        %s247 = sand.u32 %s139, 1
        %s248 = scalar_lea.sflag [#allocation5], %s247
        %s249 = sand.u32 %s139, 1
        %s250 = smul.addr %s249, 16
        %s251 = scalar_lea.vmem [#allocation8], %s250
        %p252 = scmp.lt.s32.totalorder %s21, 1
        %s253 = scalar_select %p252, %s21, 1
        %s254 = smul.addr %s253, 3
        %s255 = smul.addr %s254, 8
        %s256 = scalar_lea.vmem %s0, %s255
        %v258 = vld [vmem:[%s256] sm:$0xff]
        %v259 = vld [vmem:[%s256 + $0x8] sm:$0xff]
        %v260 = vpack.c.bf16 %v259, %v258
        %v261 = vld [vmem:[#allocation3] sm:$0xf]
        %v262 = vld [vmem:[#allocation3 + $0x4] sm:$0xf]
        %v263 = vld [vmem:[#allocation3 + $0x8] sm:$0xf]
        %v264 = vld [vmem:[#allocation3 + $0xc] sm:$0xf]
        %v265 = vld [vmem:[#allocation3 + $0x10] sm:$0xf]
        %v266 = vld [vmem:[#allocation3 + $0x14] sm:$0xf]
        %v267 = vld [vmem:[#allocation3 + $0x18] sm:$0xf]
        %v268 = vld [vmem:[#allocation3 + $0x1c] sm:$0xf]
        %v269 = vld [vmem:[%s256 + $0x1] sm:$0xff]
        %v270 = vld [vmem:[%s256 + $0x9] sm:$0xff]
        %v271 = vpack.c.bf16 %v270, %v269
        %s272 = scalar_lea.vmem [#allocation3], 32
        %v273 = vld [vmem:[%s272] sm:$0xf]
        %v274 = vld [vmem:[%s272 + $0x4] sm:$0xf]
        %v275 = vld [vmem:[%s272 + $0x8] sm:$0xf]
        %v276 = vld [vmem:[%s272 + $0xc] sm:$0xf]
        %v277 = vld [vmem:[%s272 + $0x10] sm:$0xf]
        %v278 = vld [vmem:[%s272 + $0x14] sm:$0xf]
        %v279 = vld [vmem:[%s272 + $0x18] sm:$0xf]
        %v280 = vld [vmem:[%s272 + $0x1c] sm:$0xf]
        %v289 = vunpack.c.l.b16 %v273
        %v290 = vunpack.c.l.b16 %v274
        %v291 = vunpack.c.l.b16 %v275
        %v292 = vunpack.c.l.b16 %v276
        %v293 = vunpack.c.l.b16 %v277
        %v294 = vunpack.c.l.b16 %v278
        %v295 = vunpack.c.l.b16 %v279
        %v296 = vunpack.c.l.b16 %v280
        %v297 = vpack.c.b16 %v290, %v289
        %v298 = vpack.c.b16 %v292, %v291
        %v299 = vpack.c.b16 %v294, %v293
        %v300 = vpack.c.b16 %v296, %v295
        %vm305 = vcmask 523264
        %v307 = vsel %vm305, %v271, 0
        %309 = vmatpush.bf16.msra.mxu0 0
        %310 = vmatpush.bf16.msra.mxu0 0
        %311 = vmatpush.bf16.msra.mxu0 0
        %312 = vmatpush.bf16.msra.mxu0 0
        %313 = vmatpush.bf16.msra.mxu0 %v300
        %314 = vmatpush.bf16.msra.mxu0 %v299
        %315 = vmatpush.bf16.msra.mxu0 %v298
        %316 = vmatpush.bf16.msra.mxu0 %v297
        %317 = vmatmul.bf16.gmra.mxu0 %v307
        %v318 = vpop.f32.mrf.mxu0
        %v319 = vadd.f32 0.0, %v318
        %v320 = vpop.f32.mrf.mxu0
        %v321 = vadd.f32 0.0, %v320
        %322 = vdwg.mxu0
        %v331 = vunpack.c.l.b16 %v261
        %v332 = vunpack.c.l.b16 %v262
        %v333 = vunpack.c.l.b16 %v263
        %v334 = vunpack.c.l.b16 %v264
        %v335 = vunpack.c.l.b16 %v265
        %v336 = vunpack.c.l.b16 %v266
        %v337 = vunpack.c.l.b16 %v267
        %v338 = vunpack.c.l.b16 %v268
        %v339 = vpack.c.b16 %v332, %v331
        %v340 = vpack.c.b16 %v334, %v333
        %v341 = vpack.c.b16 %v336, %v335
        %v342 = vpack.c.b16 %v338, %v337
        %v348 = vsel %vm305, %v260, 0
        %350 = vmatpush.bf16.msra.mxu0 0
        %351 = vmatpush.bf16.msra.mxu0 0
        %352 = vmatpush.bf16.msra.mxu0 0
        %353 = vmatpush.bf16.msra.mxu0 0
        %354 = vmatpush.bf16.msra.mxu0 %v342
        %355 = vmatpush.bf16.msra.mxu0 %v341
        %356 = vmatpush.bf16.msra.mxu0 %v340
        %357 = vmatpush.bf16.msra.mxu0 %v339
        %358 = vmatmul.bf16.gmra.mxu0 %v348
        %v359 = vpop.f32.mrf.mxu0
        %v360 = vadd.f32 %v319, %v359
        %v361 = vpop.f32.mrf.mxu0
        %v362 = vadd.f32 %v321, %v361
        %363 = vdwg.mxu0
        %v364 = vld [vmem:[%s256 + $0x2] sm:$0xff]
        %v365 = vld [vmem:[%s256 + $0xa] sm:$0xff]
        %v366 = vpack.c.bf16 %v365, %v364
        %s367 = scalar_lea.vmem [#allocation3], 64
        %v368 = vld [vmem:[%s367] sm:$0xf]
        %v369 = vld [vmem:[%s367 + $0x4] sm:$0xf]
        %v370 = vld [vmem:[%s367 + $0x8] sm:$0xf]
        %v371 = vld [vmem:[%s367 + $0xc] sm:$0xf]
        %v372 = vld [vmem:[%s367 + $0x10] sm:$0xf]
        %v373 = vld [vmem:[%s367 + $0x14] sm:$0xf]
        %v374 = vld [vmem:[%s367 + $0x18] sm:$0xf]
        %v375 = vld [vmem:[%s367 + $0x1c] sm:$0xf]
        %v384 = vunpack.c.l.b16 %v368
        %v385 = vunpack.c.l.b16 %v369
        %v386 = vunpack.c.l.b16 %v370
        %v387 = vunpack.c.l.b16 %v371
        %v388 = vunpack.c.l.b16 %v372
        %v389 = vunpack.c.l.b16 %v373
        %v390 = vunpack.c.l.b16 %v374
        %v391 = vunpack.c.l.b16 %v375
        %v392 = vpack.c.b16 %v385, %v384
        %v393 = vpack.c.b16 %v387, %v386
        %v394 = vpack.c.b16 %v389, %v388
        %v395 = vpack.c.b16 %v391, %v390
        %v401 = vsel %vm305, %v366, 0
        %403 = vmatpush.bf16.msra.mxu0 0
        %404 = vmatpush.bf16.msra.mxu0 0
        %405 = vmatpush.bf16.msra.mxu0 0
        %406 = vmatpush.bf16.msra.mxu0 0
        %407 = vmatpush.bf16.msra.mxu0 %v395
        %408 = vmatpush.bf16.msra.mxu0 %v394
        %409 = vmatpush.bf16.msra.mxu0 %v393
        %410 = vmatpush.bf16.msra.mxu0 %v392
        %411 = vmatmul.bf16.gmra.mxu0 %v401
        %v412 = vpop.f32.mrf.mxu0
        %v413 = vadd.f32 0.0, %v412
        %v414 = vpop.f32.mrf.mxu0
        %v415 = vadd.f32 0.0, %v414
        %416 = vdwg.mxu0
        %v417 = vadd.f32 %v360, %v413
        %v418 = vadd.f32 %v362, %v415
        %v419 = vld [vmem:[%s2] sm:$0x1]
        %v421 = vperm.slane %v419, 0
        %v423 = vadd.f32 %v417, %v421
        %v424 = vadd.f32 %v418, %v421
        %v425 = vmax.f32 %v423, 0.0
        %v426 = vmax.f32 %v424, 0.0
        %vm427 = vcmask 516096
        %428 = vst.msk [vmem:[#allocation2] sm:$0x1] %vm427, 0.0
        %429 = vst.msk [vmem:[#allocation2 + $0x11] sm:$0x1] %vm427, 0.0
        %430 = vst.msk [vmem:[#allocation2 + $0x1] sm:$0xff] %vm305, %v425
        %431 = vst.msk [vmem:[#allocation2 + $0x9] sm:$0xff] %vm305, %v426
        %v432 = vld [vmem:[#allocation2] sm:$0xff]
        %v433 = vld [vmem:[#allocation2 + $0x8] sm:$0xff]
        %v434 = vpack.c.bf16 %v433, %v432
        %v435 = vld [vmem:[#allocation6] sm:$0xf]
        %v436 = vld [vmem:[#allocation6 + $0x4] sm:$0xf]
        %v437 = vld [vmem:[#allocation6 + $0x8] sm:$0xf]
        %v438 = vld [vmem:[#allocation6 + $0xc] sm:$0xf]
        %v439 = vld [vmem:[#allocation6 + $0x10] sm:$0xf]
        %v440 = vld [vmem:[#allocation6 + $0x14] sm:$0xf]
        %v441 = vld [vmem:[#allocation6 + $0x18] sm:$0xf]
        %v442 = vld [vmem:[#allocation6 + $0x1c] sm:$0xf]
        %v443 = vld [vmem:[#allocation2 + $0x1] sm:$0xff]
        %v444 = vld [vmem:[#allocation2 + $0x9] sm:$0xff]
        %v445 = vpack.c.bf16 %v444, %v443
        %s446 = scalar_lea.vmem [#allocation6], 32
        %v447 = vld [vmem:[%s446] sm:$0xf]
        %v448 = vld [vmem:[%s446 + $0x4] sm:$0xf]
        %v449 = vld [vmem:[%s446 + $0x8] sm:$0xf]
        %v450 = vld [vmem:[%s446 + $0xc] sm:$0xf]
        %v451 = vld [vmem:[%s446 + $0x10] sm:$0xf]
        %v452 = vld [vmem:[%s446 + $0x14] sm:$0xf]
        %v453 = vld [vmem:[%s446 + $0x18] sm:$0xf]
        %v454 = vld [vmem:[%s446 + $0x1c] sm:$0xf]
        %v463 = vunpack.c.l.b16 %v447
        %v464 = vunpack.c.l.b16 %v448
        %v465 = vunpack.c.l.b16 %v449
        %v466 = vunpack.c.l.b16 %v450
        %v467 = vunpack.c.l.b16 %v451
        %v468 = vunpack.c.l.b16 %v452
        %v469 = vunpack.c.l.b16 %v453
        %v470 = vunpack.c.l.b16 %v454
        %v471 = vpack.c.b16 %v464, %v463
        %v472 = vpack.c.b16 %v466, %v465
        %v473 = vpack.c.b16 %v468, %v467
        %v474 = vpack.c.b16 %v470, %v469
        %v480 = vsel %vm305, %v445, 0
        %482 = vmatpush.bf16.msra.mxu0 0
        %483 = vmatpush.bf16.msra.mxu0 0
        %484 = vmatpush.bf16.msra.mxu0 0
        %485 = vmatpush.bf16.msra.mxu0 0
        %486 = vmatpush.bf16.msra.mxu0 %v474
        %487 = vmatpush.bf16.msra.mxu0 %v473
        %488 = vmatpush.bf16.msra.mxu0 %v472
        %489 = vmatpush.bf16.msra.mxu0 %v471
        %490 = vmatmul.bf16.gmra.mxu0 %v480
        %v491 = vpop.f32.mrf.mxu0
        %v492 = vadd.f32 0.0, %v491
        %v493 = vpop.f32.mrf.mxu0
        %v494 = vadd.f32 0.0, %v493
        %495 = vdwg.mxu0
        %v504 = vunpack.c.l.b16 %v435
        %v505 = vunpack.c.l.b16 %v436
        %v506 = vunpack.c.l.b16 %v437
        %v507 = vunpack.c.l.b16 %v438
        %v508 = vunpack.c.l.b16 %v439
        %v509 = vunpack.c.l.b16 %v440
        %v510 = vunpack.c.l.b16 %v441
        %v511 = vunpack.c.l.b16 %v442
        %v512 = vpack.c.b16 %v505, %v504
        %v513 = vpack.c.b16 %v507, %v506
        %v514 = vpack.c.b16 %v509, %v508
        %v515 = vpack.c.b16 %v511, %v510
        %v521 = vsel %vm305, %v434, 0
        %523 = vmatpush.bf16.msra.mxu0 0
        %524 = vmatpush.bf16.msra.mxu0 0
        %525 = vmatpush.bf16.msra.mxu0 0
        %526 = vmatpush.bf16.msra.mxu0 0
        %527 = vmatpush.bf16.msra.mxu0 %v515
        %528 = vmatpush.bf16.msra.mxu0 %v514
        %529 = vmatpush.bf16.msra.mxu0 %v513
        %530 = vmatpush.bf16.msra.mxu0 %v512
        %531 = vmatmul.bf16.gmra.mxu0 %v521
        %v532 = vpop.f32.mrf.mxu0
        %v533 = vadd.f32 %v492, %v532
        %v534 = vpop.f32.mrf.mxu0
        %v535 = vadd.f32 %v494, %v534
        %536 = vdwg.mxu0
        %v537 = vld [vmem:[#allocation2 + $0x2] sm:$0xff]
        %v538 = vld [vmem:[#allocation2 + $0xa] sm:$0xff]
        %v539 = vpack.c.bf16 %v538, %v537
        %s540 = scalar_lea.vmem [#allocation6], 64
        %v541 = vld [vmem:[%s540] sm:$0xf]
        %v542 = vld [vmem:[%s540 + $0x4] sm:$0xf]
        %v543 = vld [vmem:[%s540 + $0x8] sm:$0xf]
        %v544 = vld [vmem:[%s540 + $0xc] sm:$0xf]
        %v545 = vld [vmem:[%s540 + $0x10] sm:$0xf]
        %v546 = vld [vmem:[%s540 + $0x14] sm:$0xf]
        %v547 = vld [vmem:[%s540 + $0x18] sm:$0xf]
        %v548 = vld [vmem:[%s540 + $0x1c] sm:$0xf]
        %v557 = vunpack.c.l.b16 %v541
        %v558 = vunpack.c.l.b16 %v542
        %v559 = vunpack.c.l.b16 %v543
        %v560 = vunpack.c.l.b16 %v544
        %v561 = vunpack.c.l.b16 %v545
        %v562 = vunpack.c.l.b16 %v546
        %v563 = vunpack.c.l.b16 %v547
        %v564 = vunpack.c.l.b16 %v548
        %v565 = vpack.c.b16 %v558, %v557
        %v566 = vpack.c.b16 %v560, %v559
        %v567 = vpack.c.b16 %v562, %v561
        %v568 = vpack.c.b16 %v564, %v563
        %v574 = vsel %vm305, %v539, 0
        %576 = vmatpush.bf16.msra.mxu0 0
        %577 = vmatpush.bf16.msra.mxu0 0
        %578 = vmatpush.bf16.msra.mxu0 0
        %579 = vmatpush.bf16.msra.mxu0 0
        %580 = vmatpush.bf16.msra.mxu0 %v568
        %581 = vmatpush.bf16.msra.mxu0 %v567
        %582 = vmatpush.bf16.msra.mxu0 %v566
        %583 = vmatpush.bf16.msra.mxu0 %v565
        %584 = vmatmul.bf16.gmra.mxu0 %v574
        %v585 = vpop.f32.mrf.mxu0
        %v586 = vadd.f32 0.0, %v585
        %v587 = vpop.f32.mrf.mxu0
        %v588 = vadd.f32 0.0, %v587
        %589 = vdwg.mxu0
        %v590 = vadd.f32 %v533, %v586
        %v591 = vadd.f32 %v535, %v588
        %v592 = vld [vmem:[%s4] sm:$0x1]
        %v594 = vperm.slane %v592, 0
        %v596 = vadd.f32 %v590, %v594
        %v597 = vadd.f32 %v591, %v594
        %v598 = vld [vmem:[%s256 + $0x1] sm:$0xff]
        %v599 = vld [vmem:[%s256 + $0x9] sm:$0xff]
        %v600 = vadd.f32 %v596, %v598
        %v601 = vadd.f32 %v597, %v599
        %v602 = vmax.f32 %v600, 0.0
        %v603 = vmax.f32 %v601, 0.0
        %604 = vst.msk [vmem:[%s251] sm:$0xff] %vm305, %v602
        %605 = vst.msk [vmem:[%s251 + $0x8] sm:$0xff] %vm305, %v603
        %s606 = sand.u32 %s139, 1
        %s607 = scalar_lea.sflag [#allocation5], %s606
        %s608 = sand.u32 %s139, 1
        %s609 = smul.addr %s608, 16
        %s610 = scalar_lea.vmem [#allocation8], %s609
        // Predicated region
        $region49: #{tpu_custom_call.1} parent=39 // pred_check
          %p611 = pneg %p149
        $region50: #{tpu_custom_call.1} parent=39 // pred_check_branch
          %613 = sbr.rel (%p611) target = $region52
        $region51: #{tpu_custom_call.1} parent=39 // pred_region
          %615 = vsyncadd %s607, 0
          %s616 = smul.addr %s21, 2
          %s617 = smul.addr %s616, 8
          %s618 = scalar_lea.hbm %s5, %s617
          %s619 = sshll.u32 %s610, 4
          %s620 = int_to_ptr.vmem [resolvable:$true] %s619
          %s621 = sshll.u32 %s618, 4
          %s622 = int_to_ptr.hbm [resolvable:$true] %s621
          %627 = dma.vmem_to_hbm [thread:$0]  %s620, 256, %s622, %s607, 128, 128, 8
        $region52: #{tpu_custom_call.1} parent=39 // pred_fallthru
          _
      $region40: #{tpu_custom_call.1} parent=5 // pred_fallthru
        _
      %p628 = scmp.le.s32.totalorder 2, %s16
      // Predicated region
      $region53: #{tpu_custom_call.1} parent=5 // pred_check
        %p629 = pneg %p628
      $region54: #{tpu_custom_call.1} parent=5 // pred_check_branch
        %631 = sbr.rel (%p629) target = $region56
      $region55: #{tpu_custom_call.1} parent=5 // pred_region
        %s632 = ssub.s32 %s16, 2
        // Predicated region
        $region57: #{tpu_custom_call.1} parent=55 // pred_check
          %p633 = pneg %p155
        $region58: #{tpu_custom_call.1} parent=55 // pred_check_branch
          %635 = sbr.rel (%p633) target = $region60
        $region59: #{tpu_custom_call.1} parent=55 // pred_region
          %s636 = sand.u32 %s140, 1
          %s637 = scalar_lea.sflag [#allocation5], %s636
          %s638 = sand.u32 %s140, 1
          %s639 = smul.addr %s638, 16
          %s640 = scalar_lea.vmem [#allocation8], %s639
          %642 = dma.done %s637, 256
        $region60: #{tpu_custom_call.1} parent=55 // pred_fallthru
          _
      $region56: #{tpu_custom_call.1} parent=5 // pred_fallthru
        _
    $region6: #{tpu_custom_call.1} parent=1 // loop_footer
      %s20 = sadd.s32 1, %s16
    $region7: #{tpu_custom_call.1} parent=1 // loop_footer_branch
      %15 = sbr.rel target = $region3
    $region8: #{tpu_custom_call.1} parent=1 // loop_exit
      _
    %643 = vsyncpa [#allocation4], 1
    %s644 = scalar_lea.sflag [#allocation4], 1
    %645 = vsyncpa %s644, 1
    %646 = vsyncpa [#allocation7], 1
    %647 = vsyncpa [#allocation5], 1
    %s648 = scalar_lea.sflag [#allocation5], 1
    %649 = vsyncpa %s648, 1

</llo_original>
